<compile_context>
chip_gen: v7x
topology: tpu7x:2x2x1
jax: 0.10.0
libtpu: 0.0.40
codegen_flags: <defaults>
</compile_context>

<pallas_src>
import functools

import jax
import jax.numpy as jnp
from jax.experimental import pallas as pl
from jax.experimental.pallas import tpu as pltpu


def _round_up(n: int, m: int) -> int:
    return ((n + m - 1) // m) * m


def _noise_lin_relu_kernel(x_ref, n_ref, w_ref, b_ref, o_ref, xn_ref, *, tn: int):
    j = pl.program_id(1)

    # Noisy activations (f32 add + cast to MXU dtype) computed once per batch
    # tile and cached in VMEM; reused for every out-column tile j of this row
    # block.  Requires j to iterate innermost and not be megacore-sharded.
    @pl.when(j == 0)
    def _():
        xn_ref[...] = (x_ref[...].astype(jnp.float32)
                       + n_ref[...].astype(jnp.float32)).astype(xn_ref.dtype)

    # MXU matmul: (tm, in) @ (in, tn) -> (tm, tn), f32 accumulation.  The weight
    # was prepacked to (in, out) layout, so no transpose is needed here.
    y = jnp.dot(xn_ref[...], w_ref[...], preferred_element_type=jnp.float32)

    # Bias is resident as a single (1, out_pad) block; slice the lane-dense tile
    # for this j (start is statically a multiple of tn >= 128).
    col0 = pl.multiple_of(j * tn, tn)
    y = y + b_ref[:, pl.ds(col0, tn)]

    o_ref[...] = jnp.maximum(y, 0.0).astype(o_ref.dtype)


def prepack_linear(weight, bias, *, tn=256, mxu_dtype=jnp.bfloat16):
    """One-time OFFLINE prep of nn.Linear params for the Pallas kernel.

    weight: (out_size, in_size) in PyTorch layout; bias: (out_size,).
    Returns (w_packed (in_size, out_pad) mxu_dtype, b_packed (1, out_pad) f32, tn).
    Call once outside the hot path, not per forward.
    """
    out_size, in_size = weight.shape
    assert bias.shape == (out_size,)
    tn = _round_up(max(128, min(int(tn), _round_up(out_size, 128))), 128)
    out_pad = _round_up(out_size, tn)

    w_t = jnp.swapaxes(weight, 0, 1)                       # (in, out)
    if out_pad != out_size:
        w_t = jnp.pad(w_t, ((0, 0), (0, out_pad - out_size)))
    w_packed = w_t.astype(mxu_dtype)

    b = bias.reshape(1, out_size).astype(jnp.float32)
    if out_pad != out_size:
        b = jnp.pad(b, ((0, 0), (0, out_pad - out_size)))
    return w_packed, b, tn


def noise_lin_relu(x, noise, w_packed, b_packed, *, out_size, tn, tm=512,
                   out_dtype=None):
    """Fused ReLU((x + noise) @ W^T + b).

    x, noise : (B, in_size) f32.  `noise` must already be scaled by std
               (one Gaussian draw per forward, like the PyTorch Noise layer).
    w_packed : (in_size, out_pad) from prepack_linear (bf16 by default).
    b_packed : (1, out_pad) f32 from prepack_linear.
    Returns (B, out_size) in out_dtype (default: x.dtype).
    """
    B, in_size = x.shape
    assert noise.shape == x.shape
    in_w, out_pad = w_packed.shape
    assert in_w == in_size and out_pad % tn == 0
    assert b_packed.shape == (1, out_pad) and out_size <= out_pad
    out_dtype = x.dtype if out_dtype is None else out_dtype
    mxu_dtype = w_packed.dtype

    # Tile sizes: tm multiple of 8 (sublanes), tn already a multiple of 128
    # (lane-dense output).  Clamp tm to the padded batch.
    tm = _round_up(max(8, min(int(tm), _round_up(B, 8))), 8)
    b_pad = _round_up(B, tm)
    if b_pad != B:
        x = jnp.pad(x, ((0, b_pad - B), (0, 0)))
        noise = jnp.pad(noise, ((0, b_pad - B), (0, 0)))

    grid = (b_pad // tm, out_pad // tn)

    # Explicit VMEM budget: double-buffered x/noise/weight/out tiles + resident
    # bias + the cached noisy-activation scratch.
    est = (2 * (tm * in_size * x.dtype.itemsize
                + tm * in_size * noise.dtype.itemsize
                + in_size * tn * jnp.dtype(mxu_dtype).itemsize
                + tm * tn * jnp.dtype(out_dtype).itemsize)
           + out_pad * 4
           + tm * in_size * jnp.dtype(mxu_dtype).itemsize)
    # TODO(synk): for very large in_size (>~4K) add a trailing "arbitrary" K
    # grid axis with an f32 VMEM accumulator instead of using full K per step.
    assert est <= 56 * 1024 * 1024, (
        f"per-step VMEM estimate {est / 2**20:.1f} MiB too large; "
        f"shrink tm/tn or split K")
    vmem_limit = int(min(max(32 * 1024 * 1024, 2 * est), 64 * 1024 * 1024))

    kernel = functools.partial(_noise_lin_relu_kernel, tn=tn)

    out = pl.pallas_call(
        kernel,
        out_shape=jax.ShapeDtypeStruct((b_pad, out_pad), out_dtype),
        grid_spec=pltpu.PrefetchScalarGridSpec(
            num_scalar_prefetch=0,
            grid=grid,
            in_specs=[
                pl.BlockSpec((tm, in_size), lambda i, j: (i, 0)),   # x
                pl.BlockSpec((tm, in_size), lambda i, j: (i, 0)),   # noise
                pl.BlockSpec((in_size, tn), lambda i, j: (0, j)),   # bf16 weight tile
                pl.BlockSpec((1, out_pad), lambda i, j: (0, 0)),    # bias, resident
            ],
            out_specs=pl.BlockSpec((tm, tn), lambda i, j: (i, j)),
            scratch_shapes=[pltpu.VMEM((tm, in_size), mxu_dtype)],  # cached noisy x
        ),
        compiler_params=pltpu.CompilerParams(
            # j must not be megacore-sharded: the cached xn scratch is filled at
            # j == 0 of each row block.
            dimension_semantics=("parallel", "arbitrary"),
            vmem_limit_bytes=vmem_limit,
        ),
    )(x, noise, w_packed, b_packed)

    return out[:B, :out_size]


if __name__ == "__main__":
    # Small shapes consistent with the module, big enough for a 2x2 grid
    # (tm=8 row tiles; tn=128 lane-dense out tiles; OUT=192 pads to 256).
    B, IN, OUT = 16, 32, 192
    STD = 0.1

    key = jax.random.PRNGKey(0)
    k_x, k_w, k_b, k_n = jax.random.split(key, 4)

    x = jax.random.normal(k_x, (B, IN), dtype=jnp.float32)

    # nn.Linear default init: U(-1/sqrt(in), 1/sqrt(in)).
    bound = 1.0 / float(IN) ** 0.5
    weight = jax.random.uniform(k_w, (OUT, IN), dtype=jnp.float32,
                                minval=-bound, maxval=bound)
    bias = jax.random.uniform(k_b, (OUT,), dtype=jnp.float32,
                              minval=-bound, maxval=bound)

    # Offline prepack (transpose + pad + bf16 cast) — done once, off the hot path.
    w_packed, b_packed, tn = prepack_linear(weight, bias, tn=128)

    # One Gaussian draw per forward (PyTorch Noise layer semantics).
    noise = STD * jax.random.normal(k_n, x.shape, dtype=jnp.float32)

    out = noise_lin_relu(x, noise, w_packed, b_packed,
                         out_size=OUT, tn=tn, tm=8)
    out = jax.block_until_ready(out)
    assert out.shape == (B, OUT)
    assert bool(jnp.all(jnp.isfinite(out)))

    # Reference with identical numerics (bf16 MXU operands, f32 accumulation).
    xn = x + noise
    ref = jnp.maximum(
        jnp.dot(xn.astype(jnp.bfloat16), weight.T.astype(jnp.bfloat16),
                preferred_element_type=jnp.float32) + bias,
        0.0,
    ).astype(out.dtype)
    assert jnp.allclose(out, ref, atol=2e-2, rtol=2e-2), \
        float(jnp.max(jnp.abs(out - ref)))

    print("KERNEL_OK")
</pallas_src>

<mosaic_0001>
module attributes {stable_mosaic.version = 11 : i64} {
  func.func @_noise_lin_relu_kernel(%arg0: i32, %arg1: i32, %arg2: memref<8x32xf32, #tpu.memory_space<vmem>>, %arg3: memref<8x32xf32, #tpu.memory_space<vmem>>, %arg4: memref<32x128xbf16, #tpu.memory_space<vmem>>, %arg5: memref<1x256xf32, #tpu.memory_space<vmem>>, %arg6: memref<8x128xf32, #tpu.memory_space<vmem>>, %arg7: memref<8x32xbf16, #tpu.memory_space<vmem>>) attributes {dimension_semantics = [#tpu.dimension_semantics<parallel>, #tpu.dimension_semantics<arbitrary>], iteration_bounds = array<i64: 2, 2>, scalar_prefetch = 0 : i64, scratch_operands = 1 : i64, tpu.core_type = #tpu.core_type<tc>, window_params = [{transform_indices = @transform_0, window_bounds = array<i64: 8, 32>}, {transform_indices = @transform_1, window_bounds = array<i64: 8, 32>}, {transform_indices = @transform_2, window_bounds = array<i64: 32, 128>}, {pipeline_mode = #tpu.pipeline_mode<synchronous>, transform_indices = @transform_3, window_bounds = array<i64: 1, 256>}, {transform_indices = @transform_4, window_bounds = array<i64: 8, 128>}]} {
    %c0_i32 = arith.constant 0 : i32
    %0 = arith.cmpi eq, %arg1, %c0_i32 : i32
    %1 = arith.extui %0 : i1 to i32
    %c0_i32_0 = arith.constant 0 : i32
    %2 = arith.cmpi ne, %1, %c0_i32_0 : i32
    scf.if %2 {
      %c0_8 = arith.constant 0 : index
      %c0_9 = arith.constant 0 : index
      %15 = vector.load %arg2[%c0_8, %c0_9] : memref<8x32xf32, #tpu.memory_space<vmem>>, vector<8x32xf32>
      %c0_10 = arith.constant 0 : index
      %c0_11 = arith.constant 0 : index
      %16 = vector.load %arg3[%c0_10, %c0_11] : memref<8x32xf32, #tpu.memory_space<vmem>>, vector<8x32xf32>
      %17 = arith.addf %15, %16 : vector<8x32xf32>
      %18 = arith.truncf %17 : vector<8x32xf32> to vector<8x32xbf16>
      %c0_12 = arith.constant 0 : index
      %c0_13 = arith.constant 0 : index
      %19 = vector.load %arg7[%c0_12, %c0_13] : memref<8x32xbf16, #tpu.memory_space<vmem>>, vector<8x32xbf16>
      tpu.vector_store %arg7[%c0_12, %c0_13], %18 {strides = array<i32>} : memref<8x32xbf16, #tpu.memory_space<vmem>>, vector<8x32xbf16>,
    } else {
    }
    %c0 = arith.constant 0 : index
    %c0_1 = arith.constant 0 : index
    %3 = vector.load %arg7[%c0, %c0_1] : memref<8x32xbf16, #tpu.memory_space<vmem>>, vector<8x32xbf16>
    %c0_2 = arith.constant 0 : index
    %c0_3 = arith.constant 0 : index
    %4 = vector.load %arg4[%c0_2, %c0_3] : memref<32x128xbf16, #tpu.memory_space<vmem>>, vector<32x128xbf16>
    %cst = arith.constant dense<0.000000e+00> : vector<8x128xf32>
    %5 = tpu.matmul %3, %4, %cst {dimension_numbers = #tpu.dot_dimension_numbers<[1], [0], [0], [1], [0, 0, 1, 1], [], []>} : vector<8x32xbf16>, vector<32x128xbf16>, vector<8x128xf32> -> vector<8x128xf32>
    %c128_i32 = arith.constant 128 : i32
    %6 = arith.muli %arg1, %c128_i32 : i32
    %7 = tpu.assume_multiple %6, 128 : i32
    %c0_4 = arith.constant 0 : index
    %8 = arith.index_cast %7 : i32 to index
    %9 = vector.load %arg5[%c0_4, %8] : memref<1x256xf32, #tpu.memory_space<vmem>>, vector<1x128xf32>
    %10 = vector.broadcast %9 : vector<1x128xf32> to vector<8x128xf32>
    %11 = arith.addf %5, %10 : vector<8x128xf32>
    %cst_5 = arith.constant 0.000000e+00 : f32
    %12 = vector.broadcast %cst_5 : f32 to vector<8x128xf32>
    %13 = arith.maximumf %11, %12 : vector<8x128xf32>
    %c0_6 = arith.constant 0 : index
    %c0_7 = arith.constant 0 : index
    %14 = vector.load %arg6[%c0_6, %c0_7] : memref<8x128xf32, #tpu.memory_space<vmem>>, vector<8x128xf32>
    tpu.vector_store %arg6[%c0_6, %c0_7], %13 {strides = array<i32>} : memref<8x128xf32, #tpu.memory_space<vmem>>, vector<8x128xf32>,
    return
  }
  func.func @transform_0(%arg0: i32, %arg1: i32) -> (i32, i32) {
    %c0_i32 = arith.constant 0 : i32
    %c0_i32_0 = arith.constant 0 : i32
    return %arg0, %c0_i32 : i32, i32
  }
  func.func @transform_1(%arg0: i32, %arg1: i32) -> (i32, i32) {
    %c0_i32 = arith.constant 0 : i32
    %c0_i32_0 = arith.constant 0 : i32
    return %arg0, %c0_i32 : i32, i32
  }
  func.func @transform_2(%arg0: i32, %arg1: i32) -> (i32, i32) {
    %c0_i32 = arith.constant 0 : i32
    %c0_i32_0 = arith.constant 0 : i32
    return %c0_i32, %arg1 : i32, i32
  }
  func.func @transform_3(%arg0: i32, %arg1: i32) -> (i32, i32) {
    %c0_i32 = arith.constant 0 : i32
    %c0_i32_0 = arith.constant 0 : i32
    %c0_i32_1 = arith.constant 0 : i32
    return %c0_i32, %c0_i32_0 : i32, i32
  }
  func.func @transform_4(%arg0: i32, %arg1: i32) -> (i32, i32) {
    %c0_i32 = arith.constant 0 : i32
    return %arg0, %arg1 : i32, i32
  }
}

</mosaic_0001>

<llo_original>
// kernel: tpu_custom_call.1
$region0: #{tpu_custom_call.1}
  #allocation0 [shape = 'u32[]', space=smem, size = 0x4, offset = 0x4, fixed_abs, tag = 'smem constant byte address 0x4 - core index']
  #allocation1 [shape = 'u32[144,128]{1,0:T(1,128)}', space=vmem, size = 0x12000, scoped, tag = 'internal scratch']
  #allocation2 [shape = 'bf16[8,32]{1,0:T(8,128)(2,1)}', space=vmem, size = 0x800, scoped, tag = 'scratch operand']
  %s0 = inlined_call_operand.hbm [shape: f32[16,32], index: 0, kind: input, shape index: {}]
  %s1 = inlined_call_operand.hbm [shape: f32[16,32], index: 1, kind: input, shape index: {}]
  %s2 = inlined_call_operand.hbm [shape: bf16[32,256], index: 2, kind: input, shape index: {}]
  %s3 = inlined_call_operand.vmem [shape: f32[1,256], index: 3, kind: input, shape index: {}]
  %s4 = inlined_call_operand.hbm [shape: f32[16,256], index: 4, kind: output, shape index: {}]
  %s5 = sld [smem:[#allocation0]]
  $region65: #{tpu_custom_call.1} parent=0
    _
  %s7 = ssub.s32 1, %s5
  %s8 = scalar_select 0, %s7, %s5
  $region1: #{tpu_custom_call.1} parent=0
    #allocation3 [shape = 'u8[8192]{0}', space=vmem, size = 0x2000, scoped, tag = 'input window, operand 0']
    #allocation4 [shape = 's32[2]{0}', space=sflag, size = 0x8, scoped, tag = 'scoped memory for tpu_custom_call.1']
    #allocation5 [shape = 's32[2]{0}', space=sflag, size = 0x8, scoped, tag = 'scoped memory for tpu_custom_call.1']
    #allocation6 [shape = 'u8[8192]{0}', space=vmem, size = 0x2000, scoped, tag = 'input window, operand 1']
    #allocation7 [shape = 's32[2]{0}', space=sflag, size = 0x8, scoped, tag = 'scoped memory for tpu_custom_call.1']
    #allocation8 [shape = 'u8[16384]{0}', space=vmem, size = 0x4000, scoped, tag = 'input window, operand 2']
    #allocation9 [shape = 'u8[8192]{0}', space=vmem, size = 0x2000, scoped, tag = 'output window, operand 0']
    %9 = vsyncpa [#allocation4], 0
    %s10 = scalar_lea.sflag [#allocation4], 1
    %11 = vsyncpa %s10, 0
    %12 = vsyncpa [#allocation7], 0
    %s13 = scalar_lea.sflag [#allocation7], 1
    %14 = vsyncpa %s13, 0
    %15 = vsyncpa [#allocation5], 0
    %s16 = scalar_lea.sflag [#allocation5], 1
    %17 = vsyncpa %s16, 0
    loop: start=0, step=1, limit=6
    $region2: #{tpu_custom_call.1} parent=1 // loop_pre_header
      _
    $region3: #{tpu_custom_call.1} parent=1 // loop_header
      %s19 = sphi 0, %s23
      %p20 = scmp.ge.s32.totalorder %s19, 6
      %s26 = sphi 0, %s38
      %s27 = sphi 0, %s34
      %s28 = sphi 0, %s26
      %s29 = sphi 0, %s27
      %s30 = sphi 0, %s28
      %s31 = sphi 0, %s29
      %s41 = sphi 0, %s43
      %s44 = sphi 0, %s41
      %s45 = sphi 0, %s44
      %s61 = sphi 0, %s45
      %s67 = sphi 0, %s69
      %s70 = sphi 0, %s67
      %s71 = sphi 0, %s70
      %s87 = sphi 0, %s71
      %s93 = sphi 0, %s95
      %s96 = sphi 0, %s93
      %s97 = sphi 0, %s96
      %s113 = sphi 0, %s97
      %s117 = sphi 0, %s117
      %s119 = sphi 0, %s117
      %s120 = sphi 0, %s119
      %s134 = sphi 0, %s120
      %s142 = sphi 0, %s144
      %s145 = sphi 0, %s142
      %s146 = sphi 0, %s145
      %s162 = sphi 0, %s146
    $region4: #{tpu_custom_call.1} parent=1 // loop_header_branch
      %22 = sbr.rel (%p20) target = $region8
    $region5: #{tpu_custom_call.1} parent=1 // loop_body
      %s24 = ssub.s32 %s19, 1
      %s25 = ssub.s32 %s19, 2
      %s32 = sadd.s32 1, %s27
      %p33 = scmp.ge.s32.totalorder %s32, 2
      %s34 = scalar_select %p33, 0, %s32
      %s35 = sadd.s32 1, %s26
      %s36 = scalar_select %p33, %s35, %s26
      %p37 = scmp.ge.s32.totalorder %s36, 2
      %s38 = scalar_select %p37, 0, %s36
      %s39 = ssub.s32 %s26, %s38
      %p40 = scmp.eq.s32.totalorder %s39, 0
      %s42 = sadd.s32 %s41, 1
      %s43 = scalar_select %p40, %s41, %s42
      %p46 = pneg %p40
      %p47 = scmp.eq.s32.totalorder %s19, 3
      %p48 = por %p46, %p47
      %p49 = scmp.ne.s32.totalorder %s41, %s44
      %p50 = scmp.eq.s32.totalorder %s19, 0
      %p51 = por %p49, %p50
      %p52 = scmp.ne.s32.totalorder %s41, %s44
      %p53 = scmp.eq.s32.totalorder %s24, 3
      %p54 = por %p52, %p53
      %p55 = scmp.ne.s32.totalorder %s44, %s45
      %p56 = scmp.eq.s32.totalorder %s24, 0
      %p57 = por %p55, %p56
      %p58 = scmp.ne.s32.totalorder %s44, %s45
      %p59 = scmp.eq.s32.totalorder %s25, 3
      %p60 = por %p58, %p59
      %p62 = scmp.ne.s32.totalorder %s45, %s61
      %p63 = scmp.eq.s32.totalorder %s25, 0
      %p64 = por %p62, %p63
      %s65 = ssub.s32 %s26, %s38
      %p66 = scmp.eq.s32.totalorder %s65, 0
      %s68 = sadd.s32 %s67, 1
      %s69 = scalar_select %p66, %s67, %s68
      %p72 = pneg %p66
      %p73 = scmp.eq.s32.totalorder %s19, 3
      %p74 = por %p72, %p73
      %p75 = scmp.ne.s32.totalorder %s67, %s70
      %p76 = scmp.eq.s32.totalorder %s19, 0
      %p77 = por %p75, %p76
      %p78 = scmp.ne.s32.totalorder %s67, %s70
      %p79 = scmp.eq.s32.totalorder %s24, 3
      %p80 = por %p78, %p79
      %p81 = scmp.ne.s32.totalorder %s70, %s71
      %p82 = scmp.eq.s32.totalorder %s24, 0
      %p83 = por %p81, %p82
      %p84 = scmp.ne.s32.totalorder %s70, %s71
      %p85 = scmp.eq.s32.totalorder %s25, 3
      %p86 = por %p84, %p85
      %p88 = scmp.ne.s32.totalorder %s71, %s87
      %p89 = scmp.eq.s32.totalorder %s25, 0
      %p90 = por %p88, %p89
      %s91 = ssub.s32 %s27, %s34
      %p92 = scmp.eq.s32.totalorder %s91, 0
      %s94 = sadd.s32 %s93, 1
      %s95 = scalar_select %p92, %s93, %s94
      %p98 = pneg %p92
      %p99 = scmp.eq.s32.totalorder %s19, 3
      %p100 = por %p98, %p99
      %p101 = scmp.ne.s32.totalorder %s93, %s96
      %p102 = scmp.eq.s32.totalorder %s19, 0
      %p103 = por %p101, %p102
      %p104 = scmp.ne.s32.totalorder %s93, %s96
      %p105 = scmp.eq.s32.totalorder %s24, 3
      %p106 = por %p104, %p105
      %p107 = scmp.ne.s32.totalorder %s96, %s97
      %p108 = scmp.eq.s32.totalorder %s24, 0
      %p109 = por %p107, %p108
      %p110 = scmp.ne.s32.totalorder %s96, %s97
      %p111 = scmp.eq.s32.totalorder %s25, 3
      %p112 = por %p110, %p111
      %p114 = scmp.ne.s32.totalorder %s97, %s113
      %p115 = scmp.eq.s32.totalorder %s25, 0
      %p116 = por %p114, %p115
      %s118 = sadd.s32 %s117, 1
      %p121 = scmp.eq.s32.totalorder %s19, 3
      %p122 = scmp.ne.s32.totalorder %s117, %s119
      %p123 = scmp.eq.s32.totalorder %s19, 0
      %p124 = por %p122, %p123
      %p125 = scmp.ne.s32.totalorder %s117, %s119
      %p126 = scmp.eq.s32.totalorder %s24, 3
      %p127 = por %p125, %p126
      %p128 = scmp.ne.s32.totalorder %s119, %s120
      %p129 = scmp.eq.s32.totalorder %s24, 0
      %p130 = por %p128, %p129
      %p131 = scmp.ne.s32.totalorder %s119, %s120
      %p132 = scmp.eq.s32.totalorder %s25, 3
      %p133 = por %p131, %p132
      %p135 = scmp.ne.s32.totalorder %s120, %s134
      %p136 = scmp.eq.s32.totalorder %s25, 0
      %p137 = por %p135, %p136
      %s138 = ssub.s32 %s26, %s38
      %s139 = ssub.s32 %s27, %s34
      %s140 = sor.u32 %s138, %s139
      %p141 = scmp.eq.s32.totalorder %s140, 0
      %s143 = sadd.s32 %s142, 1
      %s144 = scalar_select %p141, %s142, %s143
      %p147 = pneg %p141
      %p148 = scmp.eq.s32.totalorder %s19, 3
      %p149 = por %p147, %p148
      %p150 = scmp.ne.s32.totalorder %s142, %s145
      %p151 = scmp.eq.s32.totalorder %s19, 0
      %p152 = por %p150, %p151
      %p153 = scmp.ne.s32.totalorder %s142, %s145
      %p154 = scmp.eq.s32.totalorder %s24, 3
      %p155 = por %p153, %p154
      %p156 = scmp.ne.s32.totalorder %s145, %s146
      %p157 = scmp.eq.s32.totalorder %s24, 0
      %p158 = por %p156, %p157
      %p159 = scmp.ne.s32.totalorder %s145, %s146
      %p160 = scmp.eq.s32.totalorder %s25, 3
      %p161 = por %p159, %p160
      %p163 = scmp.ne.s32.totalorder %s146, %s162
      %p164 = scmp.eq.s32.totalorder %s25, 0
      %p165 = por %p163, %p164
      %p166 = scmp.le.s32.totalorder 1, %s19
      %p167 = scmp.lt.s32.totalorder %s19, 5
      %p168 = pnand %p166, %p167
      %p169 = pneg %p168
      // Predicated region
      $region9: #{tpu_custom_call.1} parent=5 // pred_check
        _
      $region10: #{tpu_custom_call.1} parent=5 // pred_check_branch
        %171 = sbr.rel (%p168) target = $region12
      $region11: #{tpu_custom_call.1} parent=5 // pred_region
        %s172 = ssub.s32 %s19, 1
        // Predicated region
        $region13: #{tpu_custom_call.1} parent=11 // pred_check
          %p173 = pneg %p130
        $region14: #{tpu_custom_call.1} parent=11 // pred_check_branch
          %175 = sbr.rel (%p173) target = $region16
        $region15: #{tpu_custom_call.1} parent=11 // pred_region
          _
        $region16: #{tpu_custom_call.1} parent=11 // pred_fallthru
          _
      $region12: #{tpu_custom_call.1} parent=5 // pred_fallthru
        _
      %p176 = scmp.lt.s32.totalorder %s19, 4
      // Predicated region
      $region17: #{tpu_custom_call.1} parent=5 // pred_check
        %p177 = pneg %p176
      $region18: #{tpu_custom_call.1} parent=5 // pred_check_branch
        %179 = sbr.rel (%p177) target = $region20
      $region19: #{tpu_custom_call.1} parent=5 // pred_region
        // Predicated region
        $region21: #{tpu_custom_call.1} parent=19 // pred_check
          %p180 = pneg %p51
        $region22: #{tpu_custom_call.1} parent=19 // pred_check_branch
          %182 = sbr.rel (%p180) target = $region24
        $region23: #{tpu_custom_call.1} parent=19 // pred_region
          %s183 = sand.u32 %s41, 1
          %s184 = scalar_lea.sflag [#allocation4], %s183
          %s185 = sand.u32 %s41, 1
          %s186 = smul.addr %s185, 8
          %s187 = scalar_lea.vmem [#allocation3], %s186
          %s189 = ssub.s32 128, 128
          %190 = vsyncadd %s184, %s189
          %s191 = smul.addr %s26, 128
          %s192 = scalar_lea.hbm %s0, %s191
          %s194 = sshll.u32 %s187, 4
          %s195 = int_to_ptr.vmem [resolvable:$true] %s194
          %197 = dma.hbm_to_vmem [thread:$0]  %s192, 128, %s195, %s184
        $region24: #{tpu_custom_call.1} parent=19 // pred_fallthru
          _
        // Predicated region
        $region25: #{tpu_custom_call.1} parent=19 // pred_check
          %p198 = pneg %p77
        $region26: #{tpu_custom_call.1} parent=19 // pred_check_branch
          %200 = sbr.rel (%p198) target = $region28
        $region27: #{tpu_custom_call.1} parent=19 // pred_region
          %s201 = sand.u32 %s19, 1
          %s202 = scalar_lea.sflag [#allocation7], %s201
          %s203 = sand.u32 %s67, 1
          %s204 = smul.addr %s203, 8
          %s205 = scalar_lea.vmem [#allocation6], %s204
          %s207 = ssub.s32 128, 128
          %208 = vsyncadd %s202, %s207
          %s209 = smul.addr %s26, 128
          %s210 = scalar_lea.hbm %s1, %s209
          %s212 = sshll.u32 %s205, 4
          %s213 = int_to_ptr.vmem [resolvable:$true] %s212
          %215 = dma.hbm_to_vmem [thread:$0]  %s210, 128, %s213, %s202
        $region28: #{tpu_custom_call.1} parent=19 // pred_fallthru
          _
        // Predicated region
        $region29: #{tpu_custom_call.1} parent=19 // pred_check
          %p216 = pneg %p103
        $region30: #{tpu_custom_call.1} parent=19 // pred_check_branch
          %218 = sbr.rel (%p216) target = $region32
        $region31: #{tpu_custom_call.1} parent=19 // pred_region
          %s219 = sand.u32 %s19, 1
          %s220 = scalar_lea.sflag [#allocation7], %s219
          %s221 = sand.u32 %s93, 1
          %s222 = smul.addr %s221, 16
          %s223 = scalar_lea.vmem [#allocation8], %s222
          %s225 = ssub.s32 256, 256
          %226 = vsyncadd %s220, %s225
          %s227 = smul.addr %s27, 64
          %s228 = scalar_lea.hbm %s2, %s227
          %s229 = sshll.u32 %s223, 4
          %s230 = int_to_ptr.vmem [resolvable:$true] %s229
          %235 = dma.hbm_to_vmem [thread:$0]  %s228, 256, %s230, %s220, 128, 64, 4
        $region32: #{tpu_custom_call.1} parent=19 // pred_fallthru
          _
      $region20: #{tpu_custom_call.1} parent=5 // pred_fallthru
        _
      %p236 = scmp.le.s32.totalorder 1, %s19
      %p237 = scmp.lt.s32.totalorder %s19, 5
      %p238 = pnand %p236, %p237
      %p239 = pneg %p238
      // Predicated region
      $region33: #{tpu_custom_call.1} parent=5 // pred_check
        _
      $region34: #{tpu_custom_call.1} parent=5 // pred_check_branch
        %241 = sbr.rel (%p238) target = $region36
      $region35: #{tpu_custom_call.1} parent=5 // pred_region
        %s242 = ssub.s32 %s19, 1
        %s243 = sand.u32 %s44, 1
        %s244 = scalar_lea.sflag [#allocation4], %s243
        %s245 = sand.u32 %s44, 1
        %s246 = smul.addr %s245, 8
        %s247 = scalar_lea.vmem [#allocation3], %s246
        // Predicated region
        $region37: #{tpu_custom_call.1} parent=35 // pred_check
          %p248 = pneg %p57
        $region38: #{tpu_custom_call.1} parent=35 // pred_check_branch
          %250 = sbr.rel (%p248) target = $region40
        $region39: #{tpu_custom_call.1} parent=35 // pred_region
          %251 = dma.done %s244, 128
        $region40: #{tpu_custom_call.1} parent=35 // pred_fallthru
          _
        %s252 = sand.u32 %s24, 1
        %s253 = scalar_lea.sflag [#allocation7], %s252
        %s254 = sand.u32 %s70, 1
        %s255 = smul.addr %s254, 8
        %s256 = scalar_lea.vmem [#allocation6], %s255
        // Predicated region
        $region41: #{tpu_custom_call.1} parent=35 // pred_check
          %p257 = pneg %p83
        $region42: #{tpu_custom_call.1} parent=35 // pred_check_branch
          %259 = sbr.rel (%p257) target = $region44
        $region43: #{tpu_custom_call.1} parent=35 // pred_region
          %260 = dma.done %s253, 128
        $region44: #{tpu_custom_call.1} parent=35 // pred_fallthru
          _
        %s261 = sand.u32 %s24, 1
        %s262 = scalar_lea.sflag [#allocation7], %s261
        %s263 = sand.u32 %s96, 1
        %s264 = smul.addr %s263, 16
        %s265 = scalar_lea.vmem [#allocation8], %s264
        // Predicated region
        $region45: #{tpu_custom_call.1} parent=35 // pred_check
          %p266 = pneg %p109
        $region46: #{tpu_custom_call.1} parent=35 // pred_check_branch
          %268 = sbr.rel (%p266) target = $region48
        $region47: #{tpu_custom_call.1} parent=35 // pred_region
          %269 = dma.done %s262, 256
        $region48: #{tpu_custom_call.1} parent=35 // pred_fallthru
          _
        %s270 = sand.u32 %s44, 1
        %s271 = scalar_lea.sflag [#allocation4], %s270
        %s272 = sand.u32 %s44, 1
        %s273 = smul.addr %s272, 8
        %s274 = scalar_lea.vmem [#allocation3], %s273
        %p275 = pneg %p57
        %p276 = pneg %p54
        %s277 = sand.u32 %s24, 1
        %s278 = scalar_lea.sflag [#allocation7], %s277
        %s279 = sand.u32 %s70, 1
        %s280 = smul.addr %s279, 8
        %s281 = scalar_lea.vmem [#allocation6], %s280
        %p282 = pneg %p83
        %p283 = pneg %p80
        %s284 = sand.u32 %s24, 1
        %s285 = scalar_lea.sflag [#allocation7], %s284
        %s286 = sand.u32 %s96, 1
        %s287 = smul.addr %s286, 16
        %s288 = scalar_lea.vmem [#allocation8], %s287
        %p289 = pneg %p109
        %p290 = pneg %p106
        %p291 = pneg %p130
        %p292 = pneg %p127
        %p293 = pneg %p158
        %p294 = pneg %p155
        %s295 = sand.u32 %s145, 1
        %s296 = scalar_lea.sflag [#allocation5], %s295
        %s297 = sand.u32 %s145, 1
        %s298 = smul.addr %s297, 8
        %s299 = scalar_lea.vmem [#allocation9], %s298
        %p301 = scmp.eq.s32.totalorder %s29, 0
        // Predicated region
        $region49: #{tpu_custom_call.1} parent=35 // pred_check
          %p302 = pneg %p301
        $region50: #{tpu_custom_call.1} parent=35 // pred_check_branch
          %304 = sbr.rel (%p302) target = $region52
        $region51: #{tpu_custom_call.1} parent=35 // pred_region
          %v305 = vld [vmem:[%s247] sm:$0xff]
          %v306 = vld [vmem:[%s256] sm:$0xff]
          %v307 = vadd.f32 %v305, %v306
          %v308 = vpack.c.bf16 %v307, %v307
          %vm309 = vcmask 257024
          %310 = vst.msk [vmem:[#allocation2] sm:$0xf] %vm309, %v308
        $region52: #{tpu_custom_call.1} parent=35 // pred_fallthru
          _
        %v311 = vld [vmem:[#allocation2] sm:$0xf]
        %v312 = vld [vmem:[%s265] sm:$0xf]
        %v313 = vld [vmem:[%s265 + $0x4] sm:$0xf]
        %v314 = vld [vmem:[%s265 + $0x8] sm:$0xf]
        %v315 = vld [vmem:[%s265 + $0xc] sm:$0xf]
        %s316 = smul.u32 %s29, 128
        %s317 = sshra.s32 %s316, 7
        %s318 = sand.u32 %s316, 127
        %s319 = scalar_lea.vmem %s3, %s317
        %v320 = vld [vmem:[%s319] sm:$0x1]
        %v322 = vlaneseq
        %v323 = vshrl.u32 %v322, 7
        %v324 = vsub.s32 0, %v323
        %v325 = vrot.slane %v320, %v324
        %v331 = vunpack.c.l.b16 %v312
        %v332 = vunpack.c.l.b16 %v313
        %v333 = vunpack.c.l.b16 %v314
        %v334 = vunpack.c.l.b16 %v315
        %v335 = vpack.c.b16 %v332, %v331
        %v336 = vpack.c.b16 %v334, %v333
        %vm339 = vcmask 261120
        %v341 = vsel %vm339, %v311, 0
        %343 = vmatprep.subr.bf16.mxu0 0
        %344 = vmatpush1.bf16.msra.mxu0 %v335
        %345 = vmatprep.subr.bf16.mxu0 0
        %346 = vmatpush1.bf16.msra.mxu0 %v336
        %347 = vmatprep.subr.bf16.mxu0 0
        %348 = vmatpush1.bf16.msra.mxu0 0
        %349 = vmatprep.subr.bf16.mxu0 0
        %350 = vmatpush1.bf16.msra.mxu0 0
        %351 = vmatprep.subr.bf16.mxu0 0
        %352 = vmatpush1.bf16.msra.mxu0 0
        %353 = vmatprep.subr.bf16.mxu0 0
        %354 = vmatpush1.bf16.msra.mxu0 0
        %355 = vmatprep.subr.bf16.mxu0 0
        %356 = vmatpush1.bf16.msra.mxu0 0
        %357 = vmatprep.subr.bf16.mxu0 0
        %358 = vmatpush1.bf16.msra.mxu0 0
        %359 = vmatprep.subr.bf16.mxu0 0
        %360 = vmatpush1.bf16.msra.mxu0 0
        %361 = vmatprep.subr.bf16.mxu0 0
        %362 = vmatpush1.bf16.msra.mxu0 0
        %363 = vmatprep.subr.bf16.mxu0 0
        %364 = vmatpush1.bf16.msra.mxu0 0
        %365 = vmatprep.subr.bf16.mxu0 0
        %366 = vmatpush1.bf16.msra.mxu0 0
        %367 = vmatprep.subr.bf16.mxu0 0
        %368 = vmatpush1.bf16.msra.mxu0 0
        %369 = vmatprep.subr.bf16.mxu0 0
        %370 = vmatpush1.bf16.msra.mxu0 0
        %371 = vmatprep.subr.bf16.mxu0 0
        %372 = vmatpush1.bf16.msra.mxu0 0
        %373 = vmatprep.subr.bf16.mxu0 0
        %374 = vmatpush1.bf16.msra.mxu0 0
        %375 = vmatprep.mubr.bf16.mxu0 0
        %376 = vmatmul.mubr.bf16.gmra.mrb[0].mxu0 %v341
        %v377 = vpop.f32.mrb[0].mxu0
        %v378 = vadd.f32 %v325, %v377
        %v379 = vpop.f32.mrb[0].mxu0
        %v380 = vpop.f32.mrb[0].mxu0
        %v381 = vpop.f32.mrb[0].mxu0
        %382 = vdwg.mxu0
        %v383 = vmax.f32 %v378, 0.0
        %384 = vst [vmem:[%s299] sm:$0xff] %v383
        %s385 = sand.u32 %s145, 1
        %s386 = scalar_lea.sflag [#allocation5], %s385
        %s387 = sand.u32 %s145, 1
        %s388 = smul.addr %s387, 8
        %s389 = scalar_lea.vmem [#allocation9], %s388
        // Predicated region
        $region53: #{tpu_custom_call.1} parent=35 // pred_check
          %p390 = pneg %p155
        $region54: #{tpu_custom_call.1} parent=35 // pred_check_branch
          %392 = sbr.rel (%p390) target = $region56
        $region55: #{tpu_custom_call.1} parent=35 // pred_region
          %s394 = ssub.s32 128, 128
          %395 = vsyncadd %s386, %s394
          %s396 = smul.addr %s28, 2
          %s397 = sadd.s32 %s29, %s396
          %s398 = smul.addr %s397, 128
          %s399 = scalar_lea.hbm %s4, %s398
          %s401 = sshll.u32 %s389, 4
          %s402 = int_to_ptr.vmem [resolvable:$true] %s401
          %404 = dma.vmem_to_hbm [thread:$0]  %s402, 128, %s399, %s386
        $region56: #{tpu_custom_call.1} parent=35 // pred_fallthru
          _
      $region36: #{tpu_custom_call.1} parent=5 // pred_fallthru
        _
      %p405 = scmp.le.s32.totalorder 2, %s19
      // Predicated region
      $region57: #{tpu_custom_call.1} parent=5 // pred_check
        %p406 = pneg %p405
      $region58: #{tpu_custom_call.1} parent=5 // pred_check_branch
        %408 = sbr.rel (%p406) target = $region60
      $region59: #{tpu_custom_call.1} parent=5 // pred_region
        %s409 = ssub.s32 %s19, 2
        // Predicated region
        $region61: #{tpu_custom_call.1} parent=59 // pred_check
          %p410 = pneg %p161
        $region62: #{tpu_custom_call.1} parent=59 // pred_check_branch
          %412 = sbr.rel (%p410) target = $region64
        $region63: #{tpu_custom_call.1} parent=59 // pred_region
          %s413 = sand.u32 %s146, 1
          %s414 = scalar_lea.sflag [#allocation5], %s413
          %s415 = sand.u32 %s146, 1
          %s416 = smul.addr %s415, 8
          %s417 = scalar_lea.vmem [#allocation9], %s416
          %418 = dma.done %s414, 128
        $region64: #{tpu_custom_call.1} parent=59 // pred_fallthru
          _
      $region60: #{tpu_custom_call.1} parent=5 // pred_fallthru
        _
    $region6: #{tpu_custom_call.1} parent=1 // loop_footer
      %s23 = sadd.s32 1, %s19
    $region7: #{tpu_custom_call.1} parent=1 // loop_footer_branch
      %18 = sbr.rel target = $region3
    $region8: #{tpu_custom_call.1} parent=1 // loop_exit
      _
    %419 = vsyncpa [#allocation4], 1
    %s420 = scalar_lea.sflag [#allocation4], 1
    %421 = vsyncpa %s420, 1
    %422 = vsyncpa [#allocation7], 1
    %s423 = scalar_lea.sflag [#allocation7], 1
    %424 = vsyncpa %s423, 1
    %425 = vsyncpa [#allocation5], 1
    %s426 = scalar_lea.sflag [#allocation5], 1
    %427 = vsyncpa %s426, 1

</llo_original>
